<compile_context>
chip_gen: v6e
topology: v6e:2x2x1
jax: 0.10.0
libtpu: 0.0.40
codegen_flags: <defaults>
</compile_context>

<pallas_src>
import functools

import jax
import jax.numpy as jnp
from jax.experimental import pallas as pl
from jax.experimental.pallas import tpu as pltpu

_LANE = 128
_SUBLANE = 8


# ----------------------------- kernels -------------------------------------


def _epilogue(hidden_f32, b1_ref, w2_ref, b2_ref, out_refs):
    """f32 bias + ReLU on the VPU, one bf16 MXU matmul for all stacked rows."""
    h = jnp.maximum(hidden_f32 + b1_ref[...], 0.0).astype(w2_ref.dtype)
    out = jnp.dot(h, w2_ref[...], preferred_element_type=jnp.float32)
    out = out + b2_ref[...]
    tm = out_refs[0].shape[0]
    for idx, o_ref in enumerate(out_refs):
        o_ref[...] = out[idx * tm:(idx + 1) * tm, :].astype(o_ref.dtype)


def _pair_kernel(x1_ref, x2_ref, w1_ref, b1_ref, w2_ref, b2_ref,
                 o1_ref, o2_ref, *scratch, k_tiles):
    """Both branches share the W1/W2 blocks; rows are stacked so each weight
    matrix is pushed through the MXU exactly once per grid step."""
    w1 = w1_ref[...]
    x = jnp.concatenate([x1_ref[...], x2_ref[...]], axis=0).astype(w1.dtype)
    part = jnp.dot(x, w1, preferred_element_type=jnp.float32)   # (2*tm, h_pad)

    if k_tiles == 1:
        # Fused path: no accumulator, no init/finalize branches.
        _epilogue(part, b1_ref, w2_ref, b2_ref, (o1_ref, o2_ref))
    else:
        (acc_ref,) = scratch
        k = pl.program_id(1)

        @pl.when(k == 0)
        def _():
            acc_ref[...] = jnp.zeros_like(acc_ref)

        acc_ref[...] += part

        @pl.when(k == k_tiles - 1)
        def _():
            _epilogue(acc_ref[...], b1_ref, w2_ref, b2_ref, (o1_ref, o2_ref))


def _embed_kernel(x_ref, w1_ref, b1_ref, w2_ref, b2_ref, o_ref,
                  *scratch, k_tiles):
    """Single-branch embedding (get_embedding path, half the work)."""
    w1 = w1_ref[...]
    part = jnp.dot(x_ref[...].astype(w1.dtype), w1,
                   preferred_element_type=jnp.float32)

    if k_tiles == 1:
        _epilogue(part, b1_ref, w2_ref, b2_ref, (o_ref,))
    else:
        (acc_ref,) = scratch
        k = pl.program_id(1)

        @pl.when(k == 0)
        def _():
            acc_ref[...] = jnp.zeros_like(acc_ref)

        acc_ref[...] += part

        @pl.when(k == k_tiles - 1)
        def _():
            _epilogue(acc_ref[...], b1_ref, w2_ref, b2_ref, (o_ref,))


# ----------------------------- planning ------------------------------------


def _round_up(n, m):
    return ((n + m - 1) // m) * m


def _pad2d(x, rows, cols):
    pr, pc = rows - x.shape[0], cols - x.shape[1]
    if pr == 0 and pc == 0:
        return x                                   # no copy when aligned
    return jnp.pad(x, ((0, pr), (0, pc)))


def _physical_vmem_bytes():
    try:
        kind = jax.devices()[0].device_kind.lower()
    except Exception:
        kind = ""
    if "v7" in kind:
        return 64 << 20                            # v7x: 64 MiB per TC
    if "v5" in kind or "v6" in kind:
        return 128 << 20                           # v5e / v6e: 128 MiB
    return 64 << 20                                # conservative default


def _vmem_bytes(n_x, tm, tk, k_tiles, h_pad, e_pad, x_bytes):
    """Footprint of the chosen tiling (double-buffered operands + scratch)."""
    xb = n_x * 2 * tm * tk * x_bytes               # x blocks (input dtype)
    w1b = 2 * tk * h_pad * 2                       # bf16 W1 block
    w2b = 2 * h_pad * e_pad * 2                    # bf16 W2 (constant index)
    bb = 2 * (h_pad + e_pad) * 4                   # f32 biases
    ob = n_x * 2 * tm * e_pad * 4                  # f32 output blocks
    acc = (n_x * tm * h_pad * 4) if k_tiles > 1 else 0
    return xb + w1b + w2b + bb + ob + acc


def _choose_tm(batch):
    """Row tile: minimize padding waste, prefer larger tiles (fewer W1
    re-reads), keep >=2 row tiles when the batch is big enough to split so
    v7x's second TensorCore gets work."""
    if batch <= _SUBLANE:
        return _SUBLANE, _SUBLANE                  # one aligned 8-row block
    best = None
    for tm in (8, 16, 32, 64, 128, 256, 512):
        m_pad = _round_up(batch, tm)
        if batch >= 2 * _SUBLANE and m_pad // tm < 2:
            continue                               # leave work for 2nd TC
        waste = (m_pad - batch) / m_pad
        # largest tile whose padding waste stays under 12.5 %
        key = (waste > 0.125, waste if waste > 0.125 else 0.0, -tm)
        if best is None or key < best[0]:
            best = (key, tm, m_pad)
    return best[1], best[2]


def _plan(batch, d_pad, h_pad, e_pad, n_x, x_bytes):
    tm, m_pad = _choose_tm(batch)
    budget = _physical_vmem_bytes() // 2

    def fits(tk, k_tiles):
        return _vmem_bytes(n_x, tm, tk, k_tiles, h_pad, e_pad,
                           x_bytes) <= budget

    # Prefer a single K block (n_k == 1): W1 resident, no accumulator, no
    # per-step overhead. Otherwise pick the largest 128-multiple tk that
    # evenly divides d_pad and fits the budget.
    k_blocks = d_pad // _LANE
    for n_k in range(1, k_blocks + 1):
        if k_blocks % n_k:
            continue
        tk = d_pad // n_k
        if fits(tk, n_k):
            return tm, m_pad, tk, n_k
    # TODO(synk): tile the hidden/embedding dims for very large layers.
    return tm, m_pad, _LANE, k_blocks


# ----------------------------- wrappers ------------------------------------


def prepare_params(params):
    """Pad + bf16-cast the weights ONCE (hoisted out of the per-call path)."""
    w1, b1, w2, b2 = params
    d, hid = w1.shape
    emb = w2.shape[-1]
    d_pad = _round_up(d, _LANE)
    # 128-lane hidden padding: v5e's MXU is 128 wide and the first matmul is
    # weight-DMA bound at small batch; 256-padding is pure waste there.
    h_pad = _round_up(hid, _LANE)
    e_pad = _round_up(emb, _LANE)
    w1p = _pad2d(jnp.asarray(w1, jnp.float32), d_pad, h_pad).astype(jnp.bfloat16)
    b1p = _pad2d(jnp.asarray(b1, jnp.float32).reshape(1, -1), 1, h_pad)
    w2p = _pad2d(jnp.asarray(w2, jnp.float32), h_pad, e_pad).astype(jnp.bfloat16)
    b2p = _pad2d(jnp.asarray(b2, jnp.float32).reshape(1, -1), 1, e_pad)
    return (w1p, b1p, w2p, b2p), emb


def _prep_x(x, m_pad, d_pad):
    xf = x.reshape(x.shape[0], -1)                 # NCHW -> [B, D], keep dtype
    return _pad2d(xf, m_pad, d_pad)                # no-op copy when aligned


def _forward_impl(x_list, w1p, b1p, w2p, b2p, emb):
    n = len(x_list)
    batch = x_list[0].shape[0]
    d_pad, h_pad = w1p.shape
    e_pad = w2p.shape[1]
    x_bytes = jnp.dtype(x_list[0].dtype).itemsize

    tm, m_pad, tk, k_tiles = _plan(batch, d_pad, h_pad, e_pad, n, x_bytes)
    row_tiles = m_pad // tm
    xp = [_prep_x(x, m_pad, d_pad) for x in x_list]

    if k_tiles == 1:
        grid = (row_tiles,)
        x_spec = pl.BlockSpec((tm, d_pad), lambda i: (i, 0))
        w1_spec = pl.BlockSpec((d_pad, h_pad), lambda i: (0, 0))
        b1_spec = pl.BlockSpec((1, h_pad), lambda i: (0, 0))
        w2_spec = pl.BlockSpec((h_pad, e_pad), lambda i: (0, 0))
        b2_spec = pl.BlockSpec((1, e_pad), lambda i: (0, 0))
        out_spec = pl.BlockSpec((tm, e_pad), lambda i: (i, 0))
        dims = ("parallel",)
        scratch = []
        w1_bytes = d_pad * h_pad * 2               # resident, fetched once
    else:
        grid = (row_tiles, k_tiles)
        x_spec = pl.BlockSpec((tm, tk), lambda i, k: (i, k))
        w1_spec = pl.BlockSpec((tk, h_pad), lambda i, k: (k, 0))
        b1_spec = pl.BlockSpec((1, h_pad), lambda i, k: (0, 0))
        w2_spec = pl.BlockSpec((h_pad, e_pad), lambda i, k: (0, 0))
        b2_spec = pl.BlockSpec((1, e_pad), lambda i, k: (0, 0))
        out_spec = pl.BlockSpec((tm, e_pad), lambda i, k: (i, 0))
        dims = ("parallel", "arbitrary")
        scratch = [pltpu.VMEM((n * tm, h_pad), jnp.float32)]
        w1_bytes = row_tiles * d_pad * h_pad * 2   # re-read once per row tile

    kernel = functools.partial(_pair_kernel if n == 2 else _embed_kernel,
                               k_tiles=k_tiles)

    out_struct = jax.ShapeDtypeStruct((m_pad, e_pad), jnp.float32)
    out_shape = (out_struct, out_struct) if n == 2 else out_struct
    out_specs = (out_spec, out_spec) if n == 2 else out_spec

    flops = 2 * n * m_pad * (d_pad * h_pad + h_pad * e_pad)
    bytes_accessed = (n * m_pad * d_pad * x_bytes      # activations in
                      + w1_bytes                       # W1 (per-row-tile aware)
                      + h_pad * e_pad * 2              # resident W2
                      + (h_pad + e_pad) * 4            # biases
                      + n * m_pad * e_pad * 4)         # f32 outputs

    footprint = _vmem_bytes(n, tm, d_pad if k_tiles == 1 else tk,
                            k_tiles, h_pad, e_pad, x_bytes)
    phys = _physical_vmem_bytes()
    vmem_limit = int(min(max(footprint * 5 // 4 + (4 << 20), 32 << 20),
                         phys * 3 // 4))

    result = pl.pallas_call(
        kernel,
        out_shape=out_shape,
        grid_spec=pltpu.PrefetchScalarGridSpec(
            num_scalar_prefetch=0,
            grid=grid,
            in_specs=[x_spec] * n + [w1_spec, b1_spec, w2_spec, b2_spec],
            out_specs=out_specs,
            scratch_shapes=scratch,
        ),
        compiler_params=pltpu.CompilerParams(
            dimension_semantics=dims,
            vmem_limit_bytes=vmem_limit,
        ),
        cost_estimate=pl.CostEstimate(flops=flops, transcendentals=0,
                                      bytes_accessed=bytes_accessed),
    )(*xp, w1p, b1p, w2p, b2p)

    outs = result if n == 2 else (result,)
    return tuple(o[:batch, :emb] for o in outs)


def siamese_forward(x1, x2, prepped, *, emb):
    """SiameseNet.forward: returns (embedding(x1), embedding(x2))."""
    w1p, b1p, w2p, b2p = prepped
    o1, o2 = _forward_impl([x1, x2], w1p, b1p, w2p, b2p, emb)
    return o1, o2


def get_embedding(x, prepped, *, emb):
    """SiameseNet.get_embedding: single-branch embedding."""
    w1p, b1p, w2p, b2p = prepped
    (o,) = _forward_impl([x], w1p, b1p, w2p, b2p, emb)
    return o


class SiameseNet:
    """Mirror of the PyTorch module. Weights are padded / bf16-cast exactly
    once at construction (hoisted out of the per-call path)."""

    def __init__(self, params):
        self.prepped, self._emb = prepare_params(params)
        self._fwd = jax.jit(functools.partial(siamese_forward, emb=self._emb))
        self._one = jax.jit(functools.partial(get_embedding, emb=self._emb))

    def __call__(self, x1, x2):
        return self._fwd(x1, x2, self.prepped)

    forward = __call__

    def get_embedding(self, x):
        return self._one(x, self.prepped)


def init_params(key, in_dim, hidden_dim, embed_dim):
    k1, k2, k3, k4 = jax.random.split(key, 4)
    w1 = jax.random.normal(k1, (in_dim, hidden_dim), jnp.float32) * 0.02
    b1 = jax.random.normal(k2, (1, hidden_dim), jnp.float32) * 0.01
    w2 = jax.random.normal(k3, (hidden_dim, embed_dim), jnp.float32) * 0.02
    b2 = jax.random.normal(k4, (1, embed_dim), jnp.float32) * 0.01
    return (w1, b1, w2, b2)


if __name__ == "__main__":
    B, C, H, W = 2, 4, 16, 16          # NCHW inputs (PyTorch convention)
    D = C * H * W                      # 1024
    HID, EMB = 64, 32

    key = jax.random.PRNGKey(0)
    kx1, kx2, kp = jax.random.split(key, 3)
    x1 = jax.random.normal(kx1, (B, C, H, W), jnp.float32)
    x2 = jax.random.normal(kx2, (B, C, H, W), jnp.float32)
    params = init_params(kp, D, HID, EMB)

    net = SiameseNet(params)
    out1, out2 = net(x1, x2)
    jax.block_until_ready((out1, out2))

    emb1 = net.get_embedding(x1)
    jax.block_until_ready(emb1)

    # Pure-JAX f32 reference of the shared-weight MLP semantics.
    def ref(x):
        w1, b1, w2, b2 = params
        h = jnp.maximum(x.reshape(x.shape[0], -1) @ w1 + b1, 0.0)
        return h @ w2 + b2

    r1, r2 = ref(x1), ref(x2)
    assert out1.shape == (B, EMB) and out2.shape == (B, EMB)
    # bf16 MXU inputs with f32 accumulation -> loosened tolerance vs f32 ref.
    assert jnp.allclose(out1, r1, atol=2e-2, rtol=2e-2)
    assert jnp.allclose(out2, r2, atol=2e-2, rtol=2e-2)
    # get_embedding follows the same numeric path as branch 1 of forward.
    assert jnp.allclose(emb1, out1, atol=1e-5, rtol=1e-5)

    print("KERNEL_OK")
</pallas_src>

<mosaic_0001>
module attributes {stable_mosaic.version = 11 : i64} {
  func.func @_pair_kernel(%arg0: i32, %arg1: memref<8x1024xf32, #tpu.memory_space<vmem>>, %arg2: memref<8x1024xf32, #tpu.memory_space<vmem>>, %arg3: memref<1024x128xbf16, #tpu.memory_space<vmem>>, %arg4: memref<1x128xf32, #tpu.memory_space<vmem>>, %arg5: memref<128x128xbf16, #tpu.memory_space<vmem>>, %arg6: memref<1x128xf32, #tpu.memory_space<vmem>>, %arg7: memref<8x128xf32, #tpu.memory_space<vmem>>, %arg8: memref<8x128xf32, #tpu.memory_space<vmem>>) attributes {dimension_semantics = [#tpu.dimension_semantics<parallel>], iteration_bounds = array<i64: 1>, scalar_prefetch = 0 : i64, scratch_operands = 0 : i64, tpu.core_type = #tpu.core_type<tc>, window_params = [{transform_indices = @transform_0, window_bounds = array<i64: 8, 1024>}, {transform_indices = @transform_1, window_bounds = array<i64: 8, 1024>}, {pipeline_mode = #tpu.pipeline_mode<synchronous>, transform_indices = @transform_2, window_bounds = array<i64: 1024, 128>}, {pipeline_mode = #tpu.pipeline_mode<synchronous>, transform_indices = @transform_3, window_bounds = array<i64: 1, 128>}, {pipeline_mode = #tpu.pipeline_mode<synchronous>, transform_indices = @transform_4, window_bounds = array<i64: 128, 128>}, {pipeline_mode = #tpu.pipeline_mode<synchronous>, transform_indices = @transform_5, window_bounds = array<i64: 1, 128>}, {transform_indices = @transform_6, window_bounds = array<i64: 8, 128>}, {transform_indices = @transform_7, window_bounds = array<i64: 8, 128>}]} {
    %c0 = arith.constant 0 : index
    %c0_0 = arith.constant 0 : index
    %0 = vector.load %arg3[%c0, %c0_0] : memref<1024x128xbf16, #tpu.memory_space<vmem>>, vector<1024x128xbf16>
    %c0_1 = arith.constant 0 : index
    %c0_2 = arith.constant 0 : index
    %1 = vector.load %arg1[%c0_1, %c0_2] : memref<8x1024xf32, #tpu.memory_space<vmem>>, vector<8x1024xf32>
    %c0_3 = arith.constant 0 : index
    %c0_4 = arith.constant 0 : index
    %2 = vector.load %arg2[%c0_3, %c0_4] : memref<8x1024xf32, #tpu.memory_space<vmem>>, vector<8x1024xf32>
    %3 = tpu.concatenate %1, %2 in 0 : vector<8x1024xf32>, vector<8x1024xf32> -> vector<16x1024xf32>
    %4 = arith.truncf %3 : vector<16x1024xf32> to vector<16x1024xbf16>
    %cst = arith.constant dense<0.000000e+00> : vector<16x128xf32>
    %5 = tpu.matmul %4, %0, %cst {dimension_numbers = #tpu.dot_dimension_numbers<[1], [0], [0], [1], [0, 0, 1, 1], [], []>} : vector<16x1024xbf16>, vector<1024x128xbf16>, vector<16x128xf32> -> vector<16x128xf32>
    %c0_5 = arith.constant 0 : index
    %c0_6 = arith.constant 0 : index
    %6 = vector.load %arg4[%c0_5, %c0_6] : memref<1x128xf32, #tpu.memory_space<vmem>>, vector<1x128xf32>
    %7 = vector.broadcast %6 : vector<1x128xf32> to vector<16x128xf32>
    %8 = arith.addf %5, %7 : vector<16x128xf32>
    %cst_7 = arith.constant 0.000000e+00 : f32
    %9 = vector.broadcast %cst_7 : f32 to vector<16x128xf32>
    %10 = arith.maximumf %8, %9 : vector<16x128xf32>
    %11 = arith.truncf %10 : vector<16x128xf32> to vector<16x128xbf16>
    %c0_8 = arith.constant 0 : index
    %c0_9 = arith.constant 0 : index
    %12 = vector.load %arg5[%c0_8, %c0_9] : memref<128x128xbf16, #tpu.memory_space<vmem>>, vector<128x128xbf16>
    %cst_10 = arith.constant dense<0.000000e+00> : vector<16x128xf32>
    %13 = tpu.matmul %11, %12, %cst_10 {dimension_numbers = #tpu.dot_dimension_numbers<[1], [0], [0], [1], [0, 0, 1, 1], [], []>} : vector<16x128xbf16>, vector<128x128xbf16>, vector<16x128xf32> -> vector<16x128xf32>
    %c0_11 = arith.constant 0 : index
    %c0_12 = arith.constant 0 : index
    %14 = vector.load %arg6[%c0_11, %c0_12] : memref<1x128xf32, #tpu.memory_space<vmem>>, vector<1x128xf32>
    %15 = vector.broadcast %14 : vector<1x128xf32> to vector<16x128xf32>
    %16 = arith.addf %13, %15 : vector<16x128xf32>
    %17 = vector.extract_strided_slice %16 {offsets = [0, 0], sizes = [8, 128], strides = [1, 1]} : vector<16x128xf32> to vector<8x128xf32>
    %c0_13 = arith.constant 0 : index
    %c0_14 = arith.constant 0 : index
    %18 = vector.load %arg7[%c0_13, %c0_14] : memref<8x128xf32, #tpu.memory_space<vmem>>, vector<8x128xf32>
    tpu.vector_store %arg7[%c0_13, %c0_14], %17 {strides = array<i32>} : memref<8x128xf32, #tpu.memory_space<vmem>>, vector<8x128xf32>,
    %19 = vector.extract_strided_slice %16 {offsets = [8, 0], sizes = [8, 128], strides = [1, 1]} : vector<16x128xf32> to vector<8x128xf32>
    %c0_15 = arith.constant 0 : index
    %c0_16 = arith.constant 0 : index
    %20 = vector.load %arg8[%c0_15, %c0_16] : memref<8x128xf32, #tpu.memory_space<vmem>>, vector<8x128xf32>
    tpu.vector_store %arg8[%c0_15, %c0_16], %19 {strides = array<i32>} : memref<8x128xf32, #tpu.memory_space<vmem>>, vector<8x128xf32>,
    return
  }
  func.func @transform_0(%arg0: i32) -> (i32, i32) {
    %c0_i32 = arith.constant 0 : i32
    %c0_i32_0 = arith.constant 0 : i32
    return %arg0, %c0_i32 : i32, i32
  }
  func.func @transform_1(%arg0: i32) -> (i32, i32) {
    %c0_i32 = arith.constant 0 : i32
    %c0_i32_0 = arith.constant 0 : i32
    return %arg0, %c0_i32 : i32, i32
  }
  func.func @transform_2(%arg0: i32) -> (i32, i32) {
    %c0_i32 = arith.constant 0 : i32
    %c0_i32_0 = arith.constant 0 : i32
    %c0_i32_1 = arith.constant 0 : i32
    return %c0_i32, %c0_i32_0 : i32, i32
  }
  func.func @transform_3(%arg0: i32) -> (i32, i32) {
    %c0_i32 = arith.constant 0 : i32
    %c0_i32_0 = arith.constant 0 : i32
    %c0_i32_1 = arith.constant 0 : i32
    return %c0_i32, %c0_i32_0 : i32, i32
  }
  func.func @transform_4(%arg0: i32) -> (i32, i32) {
    %c0_i32 = arith.constant 0 : i32
    %c0_i32_0 = arith.constant 0 : i32
    %c0_i32_1 = arith.constant 0 : i32
    return %c0_i32, %c0_i32_0 : i32, i32
  }
  func.func @transform_5(%arg0: i32) -> (i32, i32) {
    %c0_i32 = arith.constant 0 : i32
    %c0_i32_0 = arith.constant 0 : i32
    %c0_i32_1 = arith.constant 0 : i32
    return %c0_i32, %c0_i32_0 : i32, i32
  }
  func.func @transform_6(%arg0: i32) -> (i32, i32) {
    %c0_i32 = arith.constant 0 : i32
    %c0_i32_0 = arith.constant 0 : i32
    return %arg0, %c0_i32 : i32, i32
  }
  func.func @transform_7(%arg0: i32) -> (i32, i32) {
    %c0_i32 = arith.constant 0 : i32
    %c0_i32_0 = arith.constant 0 : i32
    return %arg0, %c0_i32 : i32, i32
  }
}

</mosaic_0001>

<llo_original>
// kernel: siamese_forward.1
$region0: #{siamese_forward.1}
  #allocation0 [shape = 'u32[]', space=smem, size = 0x4, offset = 0x4, fixed_abs, tag = 'smem constant byte address 0x4 - core index']
  #allocation1 [shape = 'u32[144,128]{1,0:T(1,128)}', space=vmem, size = 0x12000, scoped, tag = 'internal scratch']
  %s0 = inlined_call_operand.vmem [shape: f32[8,1024], index: 0, kind: input, shape index: {}]
  %s1 = inlined_call_operand.vmem [shape: f32[8,1024], index: 1, kind: input, shape index: {}]
  %s2 = inlined_call_operand.hbm [shape: bf16[1024,128], index: 2, kind: input, shape index: {}]
  %s3 = inlined_call_operand.vmem [shape: f32[1,128], index: 3, kind: input, shape index: {}]
  %s4 = inlined_call_operand.vmem [shape: bf16[128,128], index: 4, kind: input, shape index: {}]
  %s5 = inlined_call_operand.vmem [shape: f32[1,128], index: 5, kind: input, shape index: {}]
  %s6 = inlined_call_operand.vmem [shape: f32[8,128], index: 6, kind: output, shape index: {0}]
  %s7 = inlined_call_operand.vmem [shape: f32[8,128], index: 7, kind: output, shape index: {1}]
  %8 = xla_tuple %s6, %s7
  %s9 = sld [smem:[#allocation0]]
  $region46: #{siamese_forward.1} parent=0
    _
  %s11 = ssub.s32 1, %s9
  %s12 = scalar_select 0, %s11, %s9
  $region1: #{siamese_forward.1} parent=0
    #allocation2 [shape = 'u8[262144]{0}', space=vmem, size = 0x40000, scoped, tag = 'input window, operand 2, single buffered']
    #allocation3 [shape = 's32[1]{0}', space=sflag, size = 0x4, scoped, tag = 'scoped memory for siamese_forward.1']
    %13 = vsyncpa [#allocation3], 0
    // Predicated region
    $region2: #{siamese_forward.1} parent=1 // pred_check
      _
    $region3: #{siamese_forward.1} parent=1 // pred_check_branch
      %15 = sbr.rel (0) target = $region5
    $region4: #{siamese_forward.1} parent=1 // pred_region
      _
    $region5: #{siamese_forward.1} parent=1 // pred_fallthru
      _
    // Predicated region
    $region6: #{siamese_forward.1} parent=1 // pred_check
      _
    $region7: #{siamese_forward.1} parent=1 // pred_check_branch
      %17 = sbr.rel (0) target = $region9
    $region8: #{siamese_forward.1} parent=1 // pred_region
      _
    $region9: #{siamese_forward.1} parent=1 // pred_fallthru
      _
    // Predicated region
    $region10: #{siamese_forward.1} parent=1 // pred_check
      _
    $region11: #{siamese_forward.1} parent=1 // pred_check_branch
      %19 = sbr.rel (0) target = $region13
    $region12: #{siamese_forward.1} parent=1 // pred_region
      %s21 = ssub.s32 8192, 8192
      %22 = vsyncadd [#allocation3], %s21
      %s23 = sshll.u32 [#allocation2], 4
      %s24 = int_to_ptr.vmem [resolvable:$true] %s23
      %29 = dma.hbm_to_vmem [thread:$0]  %s2, 8192, %s24, [#allocation3], 64, 64, 4
    $region13: #{siamese_forward.1} parent=1 // pred_fallthru
      _
    // Predicated region
    $region14: #{siamese_forward.1} parent=1 // pred_check
      _
    $region15: #{siamese_forward.1} parent=1 // pred_check_branch
      %31 = sbr.rel (0) target = $region17
    $region16: #{siamese_forward.1} parent=1 // pred_region
      _
    $region17: #{siamese_forward.1} parent=1 // pred_fallthru
      _
    // Predicated region
    $region18: #{siamese_forward.1} parent=1 // pred_check
      _
    $region19: #{siamese_forward.1} parent=1 // pred_check_branch
      %33 = sbr.rel (0) target = $region21
    $region20: #{siamese_forward.1} parent=1 // pred_region
      _
    $region21: #{siamese_forward.1} parent=1 // pred_fallthru
      _
    // Predicated region
    $region22: #{siamese_forward.1} parent=1 // pred_check
      _
    $region23: #{siamese_forward.1} parent=1 // pred_check_branch
      %35 = sbr.rel (0) target = $region25
    $region24: #{siamese_forward.1} parent=1 // pred_region
      _
    $region25: #{siamese_forward.1} parent=1 // pred_fallthru
      _
    // Predicated region
    $region26: #{siamese_forward.1} parent=1 // pred_check
      _
    $region27: #{siamese_forward.1} parent=1 // pred_check_branch
      %37 = sbr.rel (0) target = $region29
    $region28: #{siamese_forward.1} parent=1 // pred_region
      %38 = dma.done [#allocation3], 8192
    $region29: #{siamese_forward.1} parent=1 // pred_fallthru
      _
    %v40 = vld [vmem:[#allocation2] sm:$0xf]
    %v41 = vld [vmem:[#allocation2 + $0x4] sm:$0xf]
    %v42 = vld [vmem:[#allocation2 + $0x8] sm:$0xf]
    %v43 = vld [vmem:[#allocation2 + $0xc] sm:$0xf]
    %v44 = vld [vmem:[#allocation2 + $0x10] sm:$0xf]
    %v45 = vld [vmem:[#allocation2 + $0x14] sm:$0xf]
    %v46 = vld [vmem:[#allocation2 + $0x18] sm:$0xf]
    %v47 = vld [vmem:[#allocation2 + $0x1c] sm:$0xf]
    %v48 = vld [vmem:[#allocation2 + $0x20] sm:$0xf]
    %v49 = vld [vmem:[#allocation2 + $0x24] sm:$0xf]
    %v50 = vld [vmem:[#allocation2 + $0x28] sm:$0xf]
    %v51 = vld [vmem:[#allocation2 + $0x2c] sm:$0xf]
    %v52 = vld [vmem:[#allocation2 + $0x30] sm:$0xf]
    %v53 = vld [vmem:[#allocation2 + $0x34] sm:$0xf]
    %v54 = vld [vmem:[#allocation2 + $0x38] sm:$0xf]
    %v55 = vld [vmem:[#allocation2 + $0x3c] sm:$0xf]
    %v56 = vld [vmem:[#allocation2 + $0x40] sm:$0xf]
    %v57 = vld [vmem:[#allocation2 + $0x44] sm:$0xf]
    %v58 = vld [vmem:[#allocation2 + $0x48] sm:$0xf]
    %v59 = vld [vmem:[#allocation2 + $0x4c] sm:$0xf]
    %v60 = vld [vmem:[#allocation2 + $0x50] sm:$0xf]
    %v61 = vld [vmem:[#allocation2 + $0x54] sm:$0xf]
    %v62 = vld [vmem:[#allocation2 + $0x58] sm:$0xf]
    %v63 = vld [vmem:[#allocation2 + $0x5c] sm:$0xf]
    %v64 = vld [vmem:[#allocation2 + $0x60] sm:$0xf]
    %v65 = vld [vmem:[#allocation2 + $0x64] sm:$0xf]
    %v66 = vld [vmem:[#allocation2 + $0x68] sm:$0xf]
    %v67 = vld [vmem:[#allocation2 + $0x6c] sm:$0xf]
    %v68 = vld [vmem:[#allocation2 + $0x70] sm:$0xf]
    %v69 = vld [vmem:[#allocation2 + $0x74] sm:$0xf]
    %v70 = vld [vmem:[#allocation2 + $0x78] sm:$0xf]
    %v71 = vld [vmem:[#allocation2 + $0x7c] sm:$0xf]
    %v72 = vld [vmem:[#allocation2 + $0x80] sm:$0xf]
    %v73 = vld [vmem:[#allocation2 + $0x84] sm:$0xf]
    %v74 = vld [vmem:[#allocation2 + $0x88] sm:$0xf]
    %v75 = vld [vmem:[#allocation2 + $0x8c] sm:$0xf]
    %v76 = vld [vmem:[#allocation2 + $0x90] sm:$0xf]
    %v77 = vld [vmem:[#allocation2 + $0x94] sm:$0xf]
    %v78 = vld [vmem:[#allocation2 + $0x98] sm:$0xf]
    %v79 = vld [vmem:[#allocation2 + $0x9c] sm:$0xf]
    %v80 = vld [vmem:[#allocation2 + $0xa0] sm:$0xf]
    %v81 = vld [vmem:[#allocation2 + $0xa4] sm:$0xf]
    %v82 = vld [vmem:[#allocation2 + $0xa8] sm:$0xf]
    %v83 = vld [vmem:[#allocation2 + $0xac] sm:$0xf]
    %v84 = vld [vmem:[#allocation2 + $0xb0] sm:$0xf]
    %v85 = vld [vmem:[#allocation2 + $0xb4] sm:$0xf]
    %v86 = vld [vmem:[#allocation2 + $0xb8] sm:$0xf]
    %v87 = vld [vmem:[#allocation2 + $0xbc] sm:$0xf]
    %v88 = vld [vmem:[#allocation2 + $0xc0] sm:$0xf]
    %v89 = vld [vmem:[#allocation2 + $0xc4] sm:$0xf]
    %v90 = vld [vmem:[#allocation2 + $0xc8] sm:$0xf]
    %v91 = vld [vmem:[#allocation2 + $0xcc] sm:$0xf]
    %v92 = vld [vmem:[#allocation2 + $0xd0] sm:$0xf]
    %v93 = vld [vmem:[#allocation2 + $0xd4] sm:$0xf]
    %v94 = vld [vmem:[#allocation2 + $0xd8] sm:$0xf]
    %v95 = vld [vmem:[#allocation2 + $0xdc] sm:$0xf]
    %v96 = vld [vmem:[#allocation2 + $0xe0] sm:$0xf]
    %v97 = vld [vmem:[#allocation2 + $0xe4] sm:$0xf]
    %v98 = vld [vmem:[#allocation2 + $0xe8] sm:$0xf]
    %v99 = vld [vmem:[#allocation2 + $0xec] sm:$0xf]
    %v100 = vld [vmem:[#allocation2 + $0xf0] sm:$0xf]
    %v101 = vld [vmem:[#allocation2 + $0xf4] sm:$0xf]
    %v102 = vld [vmem:[#allocation2 + $0xf8] sm:$0xf]
    %v103 = vld [vmem:[#allocation2 + $0xfc] sm:$0xf]
    %v104 = vld [vmem:[#allocation2 + $0x100] sm:$0xf]
    %v105 = vld [vmem:[#allocation2 + $0x104] sm:$0xf]
    %v106 = vld [vmem:[#allocation2 + $0x108] sm:$0xf]
    %v107 = vld [vmem:[#allocation2 + $0x10c] sm:$0xf]
    %v108 = vld [vmem:[#allocation2 + $0x110] sm:$0xf]
    %v109 = vld [vmem:[#allocation2 + $0x114] sm:$0xf]
    %v110 = vld [vmem:[#allocation2 + $0x118] sm:$0xf]
    %v111 = vld [vmem:[#allocation2 + $0x11c] sm:$0xf]
    %v112 = vld [vmem:[#allocation2 + $0x120] sm:$0xf]
    %v113 = vld [vmem:[#allocation2 + $0x124] sm:$0xf]
    %v114 = vld [vmem:[#allocation2 + $0x128] sm:$0xf]
    %v115 = vld [vmem:[#allocation2 + $0x12c] sm:$0xf]
    %v116 = vld [vmem:[#allocation2 + $0x130] sm:$0xf]
    %v117 = vld [vmem:[#allocation2 + $0x134] sm:$0xf]
    %v118 = vld [vmem:[#allocation2 + $0x138] sm:$0xf]
    %v119 = vld [vmem:[#allocation2 + $0x13c] sm:$0xf]
    %v120 = vld [vmem:[#allocation2 + $0x140] sm:$0xf]
    %v121 = vld [vmem:[#allocation2 + $0x144] sm:$0xf]
    %v122 = vld [vmem:[#allocation2 + $0x148] sm:$0xf]
    %v123 = vld [vmem:[#allocation2 + $0x14c] sm:$0xf]
    %v124 = vld [vmem:[#allocation2 + $0x150] sm:$0xf]
    %v125 = vld [vmem:[#allocation2 + $0x154] sm:$0xf]
    %v126 = vld [vmem:[#allocation2 + $0x158] sm:$0xf]
    %v127 = vld [vmem:[#allocation2 + $0x15c] sm:$0xf]
    %v128 = vld [vmem:[#allocation2 + $0x160] sm:$0xf]
    %v129 = vld [vmem:[#allocation2 + $0x164] sm:$0xf]
    %v130 = vld [vmem:[#allocation2 + $0x168] sm:$0xf]
    %v131 = vld [vmem:[#allocation2 + $0x16c] sm:$0xf]
    %v132 = vld [vmem:[#allocation2 + $0x170] sm:$0xf]
    %v133 = vld [vmem:[#allocation2 + $0x174] sm:$0xf]
    %v134 = vld [vmem:[#allocation2 + $0x178] sm:$0xf]
    %v135 = vld [vmem:[#allocation2 + $0x17c] sm:$0xf]
    %v136 = vld [vmem:[#allocation2 + $0x180] sm:$0xf]
    %v137 = vld [vmem:[#allocation2 + $0x184] sm:$0xf]
    %v138 = vld [vmem:[#allocation2 + $0x188] sm:$0xf]
    %v139 = vld [vmem:[#allocation2 + $0x18c] sm:$0xf]
    %v140 = vld [vmem:[#allocation2 + $0x190] sm:$0xf]
    %v141 = vld [vmem:[#allocation2 + $0x194] sm:$0xf]
    %v142 = vld [vmem:[#allocation2 + $0x198] sm:$0xf]
    %v143 = vld [vmem:[#allocation2 + $0x19c] sm:$0xf]
    %v144 = vld [vmem:[#allocation2 + $0x1a0] sm:$0xf]
    %v145 = vld [vmem:[#allocation2 + $0x1a4] sm:$0xf]
    %v146 = vld [vmem:[#allocation2 + $0x1a8] sm:$0xf]
    %v147 = vld [vmem:[#allocation2 + $0x1ac] sm:$0xf]
    %v148 = vld [vmem:[#allocation2 + $0x1b0] sm:$0xf]
    %v149 = vld [vmem:[#allocation2 + $0x1b4] sm:$0xf]
    %v150 = vld [vmem:[#allocation2 + $0x1b8] sm:$0xf]
    %v151 = vld [vmem:[#allocation2 + $0x1bc] sm:$0xf]
    %v152 = vld [vmem:[#allocation2 + $0x1c0] sm:$0xf]
    %v153 = vld [vmem:[#allocation2 + $0x1c4] sm:$0xf]
    %v154 = vld [vmem:[#allocation2 + $0x1c8] sm:$0xf]
    %v155 = vld [vmem:[#allocation2 + $0x1cc] sm:$0xf]
    %v156 = vld [vmem:[#allocation2 + $0x1d0] sm:$0xf]
    %v157 = vld [vmem:[#allocation2 + $0x1d4] sm:$0xf]
    %v158 = vld [vmem:[#allocation2 + $0x1d8] sm:$0xf]
    %v159 = vld [vmem:[#allocation2 + $0x1dc] sm:$0xf]
    %v160 = vld [vmem:[#allocation2 + $0x1e0] sm:$0xf]
    %v161 = vld [vmem:[#allocation2 + $0x1e4] sm:$0xf]
    %v162 = vld [vmem:[#allocation2 + $0x1e8] sm:$0xf]
    %v163 = vld [vmem:[#allocation2 + $0x1ec] sm:$0xf]
    %v164 = vld [vmem:[#allocation2 + $0x1f0] sm:$0xf]
    %v165 = vld [vmem:[#allocation2 + $0x1f4] sm:$0xf]
    %v166 = vld [vmem:[#allocation2 + $0x1f8] sm:$0xf]
    %v167 = vld [vmem:[#allocation2 + $0x1fc] sm:$0xf]
    %v168 = vld [vmem:[%s0] sm:$0xff]
    %v169 = vld [vmem:[%s0 + $0x8] sm:$0xff]
    %v170 = vld [vmem:[%s0 + $0x10] sm:$0xff]
    %v171 = vld [vmem:[%s0 + $0x18] sm:$0xff]
    %v172 = vld [vmem:[%s0 + $0x20] sm:$0xff]
    %v173 = vld [vmem:[%s0 + $0x28] sm:$0xff]
    %v174 = vld [vmem:[%s0 + $0x30] sm:$0xff]
    %v175 = vld [vmem:[%s0 + $0x38] sm:$0xff]
    %v176 = vld [vmem:[%s1] sm:$0xff]
    %v177 = vld [vmem:[%s1 + $0x8] sm:$0xff]
    %v178 = vld [vmem:[%s1 + $0x10] sm:$0xff]
    %v179 = vld [vmem:[%s1 + $0x18] sm:$0xff]
    %v180 = vld [vmem:[%s1 + $0x20] sm:$0xff]
    %v181 = vld [vmem:[%s1 + $0x28] sm:$0xff]
    %v182 = vld [vmem:[%s1 + $0x30] sm:$0xff]
    %v183 = vld [vmem:[%s1 + $0x38] sm:$0xff]
    %v184 = vpack.c.bf16 %v176, %v168
    %v185 = vpack.c.bf16 %v177, %v169
    %v186 = vpack.c.bf16 %v178, %v170
    %v187 = vpack.c.bf16 %v179, %v171
    %v188 = vpack.c.bf16 %v180, %v172
    %v189 = vpack.c.bf16 %v181, %v173
    %v190 = vpack.c.bf16 %v182, %v174
    %v191 = vpack.c.bf16 %v183, %v175
    %v192 = vld [vmem:[%s3] sm:$0x1]
    %v194 = vlaneseq
    %v195 = vshrl.u32 %v194, 7
    %v196 = vsub.s32 0, %v195
    %v197 = vrot.slane %v192, %v196
    %v327 = vunpack.c.l.b16 %v40
    %v328 = vunpack.c.l.b16 %v41
    %v329 = vunpack.c.l.b16 %v42
    %v330 = vunpack.c.l.b16 %v43
    %v331 = vunpack.c.l.b16 %v44
    %v332 = vunpack.c.l.b16 %v45
    %v333 = vunpack.c.l.b16 %v46
    %v334 = vunpack.c.l.b16 %v47
    %v335 = vunpack.c.l.b16 %v48
    %v336 = vunpack.c.l.b16 %v49
    %v337 = vunpack.c.l.b16 %v50
    %v338 = vunpack.c.l.b16 %v51
    %v339 = vunpack.c.l.b16 %v52
    %v340 = vunpack.c.l.b16 %v53
    %v341 = vunpack.c.l.b16 %v54
    %v342 = vunpack.c.l.b16 %v55
    %v343 = vunpack.c.l.b16 %v56
    %v344 = vunpack.c.l.b16 %v57
    %v345 = vunpack.c.l.b16 %v58
    %v346 = vunpack.c.l.b16 %v59
    %v347 = vunpack.c.l.b16 %v60
    %v348 = vunpack.c.l.b16 %v61
    %v349 = vunpack.c.l.b16 %v62
    %v350 = vunpack.c.l.b16 %v63
    %v351 = vunpack.c.l.b16 %v64
    %v352 = vunpack.c.l.b16 %v65
    %v353 = vunpack.c.l.b16 %v66
    %v354 = vunpack.c.l.b16 %v67
    %v355 = vunpack.c.l.b16 %v68
    %v356 = vunpack.c.l.b16 %v69
    %v357 = vunpack.c.l.b16 %v70
    %v358 = vunpack.c.l.b16 %v71
    %v359 = vunpack.c.l.b16 %v72
    %v360 = vunpack.c.l.b16 %v73
    %v361 = vunpack.c.l.b16 %v74
    %v362 = vunpack.c.l.b16 %v75
    %v363 = vunpack.c.l.b16 %v76
    %v364 = vunpack.c.l.b16 %v77
    %v365 = vunpack.c.l.b16 %v78
    %v366 = vunpack.c.l.b16 %v79
    %v367 = vunpack.c.l.b16 %v80
    %v368 = vunpack.c.l.b16 %v81
    %v369 = vunpack.c.l.b16 %v82
    %v370 = vunpack.c.l.b16 %v83
    %v371 = vunpack.c.l.b16 %v84
    %v372 = vunpack.c.l.b16 %v85
    %v373 = vunpack.c.l.b16 %v86
    %v374 = vunpack.c.l.b16 %v87
    %v375 = vunpack.c.l.b16 %v88
    %v376 = vunpack.c.l.b16 %v89
    %v377 = vunpack.c.l.b16 %v90
    %v378 = vunpack.c.l.b16 %v91
    %v379 = vunpack.c.l.b16 %v92
    %v380 = vunpack.c.l.b16 %v93
    %v381 = vunpack.c.l.b16 %v94
    %v382 = vunpack.c.l.b16 %v95
    %v383 = vunpack.c.l.b16 %v96
    %v384 = vunpack.c.l.b16 %v97
    %v385 = vunpack.c.l.b16 %v98
    %v386 = vunpack.c.l.b16 %v99
    %v387 = vunpack.c.l.b16 %v100
    %v388 = vunpack.c.l.b16 %v101
    %v389 = vunpack.c.l.b16 %v102
    %v390 = vunpack.c.l.b16 %v103
    %v391 = vunpack.c.l.b16 %v104
    %v392 = vunpack.c.l.b16 %v105
    %v393 = vunpack.c.l.b16 %v106
    %v394 = vunpack.c.l.b16 %v107
    %v395 = vunpack.c.l.b16 %v108
    %v396 = vunpack.c.l.b16 %v109
    %v397 = vunpack.c.l.b16 %v110
    %v398 = vunpack.c.l.b16 %v111
    %v399 = vunpack.c.l.b16 %v112
    %v400 = vunpack.c.l.b16 %v113
    %v401 = vunpack.c.l.b16 %v114
    %v402 = vunpack.c.l.b16 %v115
    %v403 = vunpack.c.l.b16 %v116
    %v404 = vunpack.c.l.b16 %v117
    %v405 = vunpack.c.l.b16 %v118
    %v406 = vunpack.c.l.b16 %v119
    %v407 = vunpack.c.l.b16 %v120
    %v408 = vunpack.c.l.b16 %v121
    %v409 = vunpack.c.l.b16 %v122
    %v410 = vunpack.c.l.b16 %v123
    %v411 = vunpack.c.l.b16 %v124
    %v412 = vunpack.c.l.b16 %v125
    %v413 = vunpack.c.l.b16 %v126
    %v414 = vunpack.c.l.b16 %v127
    %v415 = vunpack.c.l.b16 %v128
    %v416 = vunpack.c.l.b16 %v129
    %v417 = vunpack.c.l.b16 %v130
    %v418 = vunpack.c.l.b16 %v131
    %v419 = vunpack.c.l.b16 %v132
    %v420 = vunpack.c.l.b16 %v133
    %v421 = vunpack.c.l.b16 %v134
    %v422 = vunpack.c.l.b16 %v135
    %v423 = vunpack.c.l.b16 %v136
    %v424 = vunpack.c.l.b16 %v137
    %v425 = vunpack.c.l.b16 %v138
    %v426 = vunpack.c.l.b16 %v139
    %v427 = vunpack.c.l.b16 %v140
    %v428 = vunpack.c.l.b16 %v141
    %v429 = vunpack.c.l.b16 %v142
    %v430 = vunpack.c.l.b16 %v143
    %v431 = vunpack.c.l.b16 %v144
    %v432 = vunpack.c.l.b16 %v145
    %v433 = vunpack.c.l.b16 %v146
    %v434 = vunpack.c.l.b16 %v147
    %v435 = vunpack.c.l.b16 %v148
    %v436 = vunpack.c.l.b16 %v149
    %v437 = vunpack.c.l.b16 %v150
    %v438 = vunpack.c.l.b16 %v151
    %v439 = vunpack.c.l.b16 %v152
    %v440 = vunpack.c.l.b16 %v153
    %v441 = vunpack.c.l.b16 %v154
    %v442 = vunpack.c.l.b16 %v155
    %v443 = vunpack.c.l.b16 %v156
    %v444 = vunpack.c.l.b16 %v157
    %v445 = vunpack.c.l.b16 %v158
    %v446 = vunpack.c.l.b16 %v159
    %v447 = vunpack.c.l.b16 %v160
    %v448 = vunpack.c.l.b16 %v161
    %v449 = vunpack.c.l.b16 %v162
    %v450 = vunpack.c.l.b16 %v163
    %v451 = vunpack.c.l.b16 %v164
    %v452 = vunpack.c.l.b16 %v165
    %v453 = vunpack.c.l.b16 %v166
    %v454 = vunpack.c.l.b16 %v167
    %v455 = vpack.c.b16 %v328, %v327
    %v456 = vpack.c.b16 %v330, %v329
    %v457 = vpack.c.b16 %v332, %v331
    %v458 = vpack.c.b16 %v334, %v333
    %v459 = vpack.c.b16 %v336, %v335
    %v460 = vpack.c.b16 %v338, %v337
    %v461 = vpack.c.b16 %v340, %v339
    %v462 = vpack.c.b16 %v342, %v341
    %v463 = vpack.c.b16 %v344, %v343
    %v464 = vpack.c.b16 %v346, %v345
    %v465 = vpack.c.b16 %v348, %v347
    %v466 = vpack.c.b16 %v350, %v349
    %v467 = vpack.c.b16 %v352, %v351
    %v468 = vpack.c.b16 %v354, %v353
    %v469 = vpack.c.b16 %v356, %v355
    %v470 = vpack.c.b16 %v358, %v357
    %v471 = vpack.c.b16 %v360, %v359
    %v472 = vpack.c.b16 %v362, %v361
    %v473 = vpack.c.b16 %v364, %v363
    %v474 = vpack.c.b16 %v366, %v365
    %v475 = vpack.c.b16 %v368, %v367
    %v476 = vpack.c.b16 %v370, %v369
    %v477 = vpack.c.b16 %v372, %v371
    %v478 = vpack.c.b16 %v374, %v373
    %v479 = vpack.c.b16 %v376, %v375
    %v480 = vpack.c.b16 %v378, %v377
    %v481 = vpack.c.b16 %v380, %v379
    %v482 = vpack.c.b16 %v382, %v381
    %v483 = vpack.c.b16 %v384, %v383
    %v484 = vpack.c.b16 %v386, %v385
    %v485 = vpack.c.b16 %v388, %v387
    %v486 = vpack.c.b16 %v390, %v389
    %v487 = vpack.c.b16 %v392, %v391
    %v488 = vpack.c.b16 %v394, %v393
    %v489 = vpack.c.b16 %v396, %v395
    %v490 = vpack.c.b16 %v398, %v397
    %v491 = vpack.c.b16 %v400, %v399
    %v492 = vpack.c.b16 %v402, %v401
    %v493 = vpack.c.b16 %v404, %v403
    %v494 = vpack.c.b16 %v406, %v405
    %v495 = vpack.c.b16 %v408, %v407
    %v496 = vpack.c.b16 %v410, %v409
    %v497 = vpack.c.b16 %v412, %v411
    %v498 = vpack.c.b16 %v414, %v413
    %v499 = vpack.c.b16 %v416, %v415
    %v500 = vpack.c.b16 %v418, %v417
    %v501 = vpack.c.b16 %v420, %v419
    %v502 = vpack.c.b16 %v422, %v421
    %v503 = vpack.c.b16 %v424, %v423
    %v504 = vpack.c.b16 %v426, %v425
    %v505 = vpack.c.b16 %v428, %v427
    %v506 = vpack.c.b16 %v430, %v429
    %v507 = vpack.c.b16 %v432, %v431
    %v508 = vpack.c.b16 %v434, %v433
    %v509 = vpack.c.b16 %v436, %v435
    %v510 = vpack.c.b16 %v438, %v437
    %v511 = vpack.c.b16 %v440, %v439
    %v512 = vpack.c.b16 %v442, %v441
    %v513 = vpack.c.b16 %v444, %v443
    %v514 = vpack.c.b16 %v446, %v445
    %v515 = vpack.c.b16 %v448, %v447
    %v516 = vpack.c.b16 %v450, %v449
    %v517 = vpack.c.b16 %v452, %v451
    %v518 = vpack.c.b16 %v454, %v453
    %583 = vmatprep.subr.bf16.mxu0 0
    %584 = vmatpush1.bf16.msra.mxu0 %v462
    %585 = vmatprep.subr.bf16.mxu0 0
    %586 = vmatpush1.bf16.msra.mxu0 %v461
    %587 = vmatprep.subr.bf16.mxu0 0
    %588 = vmatpush1.bf16.msra.mxu0 %v460
    %589 = vmatprep.subr.bf16.mxu0 0
    %590 = vmatpush1.bf16.msra.mxu0 %v459
    %591 = vmatprep.subr.bf16.mxu0 0
    %592 = vmatpush1.bf16.msra.mxu0 %v458
    %593 = vmatprep.subr.bf16.mxu0 0
    %594 = vmatpush1.bf16.msra.mxu0 %v457
    %595 = vmatprep.subr.bf16.mxu0 0
    %596 = vmatpush1.bf16.msra.mxu0 %v456
    %597 = vmatprep.subr.bf16.mxu0 0
    %598 = vmatpush1.bf16.msra.mxu0 %v455
    %599 = vmatprep.subr.bf16.mxu0 0
    %600 = vmatpush2.bf16.msra.mxu0 %v470
    %601 = vmatprep.subr.bf16.mxu0 0
    %602 = vmatpush2.bf16.msra.mxu0 %v469
    %603 = vmatprep.subr.bf16.mxu0 0
    %604 = vmatpush2.bf16.msra.mxu0 %v468
    %605 = vmatprep.subr.bf16.mxu0 0
    %606 = vmatpush2.bf16.msra.mxu0 %v467
    %607 = vmatprep.subr.bf16.mxu0 0
    %608 = vmatpush2.bf16.msra.mxu0 %v466
    %609 = vmatprep.subr.bf16.mxu0 0
    %610 = vmatpush2.bf16.msra.mxu0 %v465
    %611 = vmatprep.subr.bf16.mxu0 0
    %612 = vmatpush2.bf16.msra.mxu0 %v464
    %613 = vmatprep.subr.bf16.mxu0 0
    %614 = vmatpush2.bf16.msra.mxu0 %v463
    %615 = vmatprep.mubr.bf16.mxu0 %v185
    %616 = vmatmul.mubr.bf16.gmra.mxu0 %v184
    %v617 = vpop.f32.mrf.mxu0
    %v618 = vadd.f32 %v197, %v617
    %v619 = vpop.f32.mrf.mxu0
    %v620 = vpop.f32.mrf.mxu0
    %v621 = vadd.f32 %v197, %v620
    %v622 = vpop.f32.mrf.mxu0
    %623 = vdwg.mxu0
    %624 = vmatprep.subr.bf16.mxu0 0
    %625 = vmatpush1.bf16.msra.mxu0 %v478
    %626 = vmatprep.subr.bf16.mxu0 0
    %627 = vmatpush1.bf16.msra.mxu0 %v477
    %628 = vmatprep.subr.bf16.mxu0 0
    %629 = vmatpush1.bf16.msra.mxu0 %v476
    %630 = vmatprep.subr.bf16.mxu0 0
    %631 = vmatpush1.bf16.msra.mxu0 %v475
    %632 = vmatprep.subr.bf16.mxu0 0
    %633 = vmatpush1.bf16.msra.mxu0 %v474
    %634 = vmatprep.subr.bf16.mxu0 0
    %635 = vmatpush1.bf16.msra.mxu0 %v473
    %636 = vmatprep.subr.bf16.mxu0 0
    %637 = vmatpush1.bf16.msra.mxu0 %v472
    %638 = vmatprep.subr.bf16.mxu0 0
    %639 = vmatpush1.bf16.msra.mxu0 %v471
    %640 = vmatprep.subr.bf16.mxu0 0
    %641 = vmatpush2.bf16.msra.mxu0 %v486
    %642 = vmatprep.subr.bf16.mxu0 0
    %643 = vmatpush2.bf16.msra.mxu0 %v485
    %644 = vmatprep.subr.bf16.mxu0 0
    %645 = vmatpush2.bf16.msra.mxu0 %v484
    %646 = vmatprep.subr.bf16.mxu0 0
    %647 = vmatpush2.bf16.msra.mxu0 %v483
    %648 = vmatprep.subr.bf16.mxu0 0
    %649 = vmatpush2.bf16.msra.mxu0 %v482
    %650 = vmatprep.subr.bf16.mxu0 0
    %651 = vmatpush2.bf16.msra.mxu0 %v481
    %652 = vmatprep.subr.bf16.mxu0 0
    %653 = vmatpush2.bf16.msra.mxu0 %v480
    %654 = vmatprep.subr.bf16.mxu0 0
    %655 = vmatpush2.bf16.msra.mxu0 %v479
    %656 = vmatprep.mubr.bf16.mxu0 %v187
    %657 = vmatmul.mubr.bf16.gmra.mxu0 %v186
    %v658 = vpop.f32.mrf.mxu0
    %v659 = vadd.f32 %v618, %v658
    %v660 = vpop.f32.mrf.mxu0
    %v661 = vpop.f32.mrf.mxu0
    %v662 = vadd.f32 %v621, %v661
    %v663 = vpop.f32.mrf.mxu0
    %664 = vdwg.mxu0
    %665 = vmatprep.subr.bf16.mxu0 0
    %666 = vmatpush1.bf16.msra.mxu0 %v494
    %667 = vmatprep.subr.bf16.mxu0 0
    %668 = vmatpush1.bf16.msra.mxu0 %v493
    %669 = vmatprep.subr.bf16.mxu0 0
    %670 = vmatpush1.bf16.msra.mxu0 %v492
    %671 = vmatprep.subr.bf16.mxu0 0
    %672 = vmatpush1.bf16.msra.mxu0 %v491
    %673 = vmatprep.subr.bf16.mxu0 0
    %674 = vmatpush1.bf16.msra.mxu0 %v490
    %675 = vmatprep.subr.bf16.mxu0 0
    %676 = vmatpush1.bf16.msra.mxu0 %v489
    %677 = vmatprep.subr.bf16.mxu0 0
    %678 = vmatpush1.bf16.msra.mxu0 %v488
    %679 = vmatprep.subr.bf16.mxu0 0
    %680 = vmatpush1.bf16.msra.mxu0 %v487
    %681 = vmatprep.subr.bf16.mxu0 0
    %682 = vmatpush2.bf16.msra.mxu0 %v502
    %683 = vmatprep.subr.bf16.mxu0 0
    %684 = vmatpush2.bf16.msra.mxu0 %v501
    %685 = vmatprep.subr.bf16.mxu0 0
    %686 = vmatpush2.bf16.msra.mxu0 %v500
    %687 = vmatprep.subr.bf16.mxu0 0
    %688 = vmatpush2.bf16.msra.mxu0 %v499
    %689 = vmatprep.subr.bf16.mxu0 0
    %690 = vmatpush2.bf16.msra.mxu0 %v498
    %691 = vmatprep.subr.bf16.mxu0 0
    %692 = vmatpush2.bf16.msra.mxu0 %v497
    %693 = vmatprep.subr.bf16.mxu0 0
    %694 = vmatpush2.bf16.msra.mxu0 %v496
    %695 = vmatprep.subr.bf16.mxu0 0
    %696 = vmatpush2.bf16.msra.mxu0 %v495
    %697 = vmatprep.mubr.bf16.mxu0 %v189
    %698 = vmatmul.mubr.bf16.gmra.mxu0 %v188
    %v699 = vpop.f32.mrf.mxu0
    %v700 = vadd.f32 %v659, %v699
    %v701 = vpop.f32.mrf.mxu0
    %v702 = vpop.f32.mrf.mxu0
    %v703 = vadd.f32 %v662, %v702
    %v704 = vpop.f32.mrf.mxu0
    %705 = vdwg.mxu0
    %706 = vmatprep.subr.bf16.mxu0 0
    %707 = vmatpush1.bf16.msra.mxu0 %v510
    %708 = vmatprep.subr.bf16.mxu0 0
    %709 = vmatpush1.bf16.msra.mxu0 %v509
    %710 = vmatprep.subr.bf16.mxu0 0
    %711 = vmatpush1.bf16.msra.mxu0 %v508
    %712 = vmatprep.subr.bf16.mxu0 0
    %713 = vmatpush1.bf16.msra.mxu0 %v507
    %714 = vmatprep.subr.bf16.mxu0 0
    %715 = vmatpush1.bf16.msra.mxu0 %v506
    %716 = vmatprep.subr.bf16.mxu0 0
    %717 = vmatpush1.bf16.msra.mxu0 %v505
    %718 = vmatprep.subr.bf16.mxu0 0
    %719 = vmatpush1.bf16.msra.mxu0 %v504
    %720 = vmatprep.subr.bf16.mxu0 0
    %721 = vmatpush1.bf16.msra.mxu0 %v503
    %722 = vmatprep.subr.bf16.mxu0 0
    %723 = vmatpush2.bf16.msra.mxu0 %v518
    %724 = vmatprep.subr.bf16.mxu0 0
    %725 = vmatpush2.bf16.msra.mxu0 %v517
    %726 = vmatprep.subr.bf16.mxu0 0
    %727 = vmatpush2.bf16.msra.mxu0 %v516
    %728 = vmatprep.subr.bf16.mxu0 0
    %729 = vmatpush2.bf16.msra.mxu0 %v515
    %730 = vmatprep.subr.bf16.mxu0 0
    %731 = vmatpush2.bf16.msra.mxu0 %v514
    %732 = vmatprep.subr.bf16.mxu0 0
    %733 = vmatpush2.bf16.msra.mxu0 %v513
    %734 = vmatprep.subr.bf16.mxu0 0
    %735 = vmatpush2.bf16.msra.mxu0 %v512
    %736 = vmatprep.subr.bf16.mxu0 0
    %737 = vmatpush2.bf16.msra.mxu0 %v511
    %738 = vmatprep.mubr.bf16.mxu0 %v191
    %739 = vmatmul.mubr.bf16.gmra.mxu0 %v190
    %v740 = vpop.f32.mrf.mxu0
    %v741 = vadd.f32 %v700, %v740
    %v742 = vpop.f32.mrf.mxu0
    %v743 = vpop.f32.mrf.mxu0
    %v744 = vadd.f32 %v703, %v743
    %v745 = vpop.f32.mrf.mxu0
    %746 = vdwg.mxu0
    %v747 = vmax.f32 %v741, 0.0
    %v748 = vmax.f32 %v744, 0.0
    %v749 = vpack.c.bf16 %v748, %v747
    %v750 = vld [vmem:[%s4] sm:$0xf]
    %v751 = vld [vmem:[%s4 + $0x4] sm:$0xf]
    %v752 = vld [vmem:[%s4 + $0x8] sm:$0xf]
    %v753 = vld [vmem:[%s4 + $0xc] sm:$0xf]
    %v754 = vld [vmem:[%s4 + $0x10] sm:$0xf]
    %v755 = vld [vmem:[%s4 + $0x14] sm:$0xf]
    %v756 = vld [vmem:[%s4 + $0x18] sm:$0xf]
    %v757 = vld [vmem:[%s4 + $0x1c] sm:$0xf]
    %v758 = vld [vmem:[%s4 + $0x20] sm:$0xf]
    %v759 = vld [vmem:[%s4 + $0x24] sm:$0xf]
    %v760 = vld [vmem:[%s4 + $0x28] sm:$0xf]
    %v761 = vld [vmem:[%s4 + $0x2c] sm:$0xf]
    %v762 = vld [vmem:[%s4 + $0x30] sm:$0xf]
    %v763 = vld [vmem:[%s4 + $0x34] sm:$0xf]
    %v764 = vld [vmem:[%s4 + $0x38] sm:$0xf]
    %v765 = vld [vmem:[%s4 + $0x3c] sm:$0xf]
    %v766 = vld [vmem:[%s5] sm:$0x1]
    %v768 = vlaneseq
    %v769 = vshrl.u32 %v768, 7
    %v770 = vsub.s32 0, %v769
    %v771 = vrot.slane %v766, %v770
    %v789 = vunpack.c.l.b16 %v750
    %v790 = vunpack.c.l.b16 %v751
    %v791 = vunpack.c.l.b16 %v752
    %v792 = vunpack.c.l.b16 %v753
    %v793 = vunpack.c.l.b16 %v754
    %v794 = vunpack.c.l.b16 %v755
    %v795 = vunpack.c.l.b16 %v756
    %v796 = vunpack.c.l.b16 %v757
    %v797 = vunpack.c.l.b16 %v758
    %v798 = vunpack.c.l.b16 %v759
    %v799 = vunpack.c.l.b16 %v760
    %v800 = vunpack.c.l.b16 %v761
    %v801 = vunpack.c.l.b16 %v762
    %v802 = vunpack.c.l.b16 %v763
    %v803 = vunpack.c.l.b16 %v764
    %v804 = vunpack.c.l.b16 %v765
    %v805 = vpack.c.b16 %v790, %v789
    %v806 = vpack.c.b16 %v792, %v791
    %v807 = vpack.c.b16 %v794, %v793
    %v808 = vpack.c.b16 %v796, %v795
    %v809 = vpack.c.b16 %v798, %v797
    %v810 = vpack.c.b16 %v800, %v799
    %v811 = vpack.c.b16 %v802, %v801
    %v812 = vpack.c.b16 %v804, %v803
    %821 = vmatprep.subr.bf16.mxu0 0
    %822 = vmatpush1.bf16.msra.mxu0 %v812
    %823 = vmatprep.subr.bf16.mxu0 0
    %824 = vmatpush1.bf16.msra.mxu0 %v811
    %825 = vmatprep.subr.bf16.mxu0 0
    %826 = vmatpush1.bf16.msra.mxu0 %v810
    %827 = vmatprep.subr.bf16.mxu0 0
    %828 = vmatpush1.bf16.msra.mxu0 %v809
    %829 = vmatprep.subr.bf16.mxu0 0
    %830 = vmatpush1.bf16.msra.mxu0 %v808
    %831 = vmatprep.subr.bf16.mxu0 0
    %832 = vmatpush1.bf16.msra.mxu0 %v807
    %833 = vmatprep.subr.bf16.mxu0 0
    %834 = vmatpush1.bf16.msra.mxu0 %v806
    %835 = vmatprep.subr.bf16.mxu0 0
    %836 = vmatpush1.bf16.msra.mxu0 %v805
    %837 = vmatprep.subr.bf16.mxu0 0
    %838 = vmatpush2.bf16.msra.mxu0 0
    %839 = vmatprep.subr.bf16.mxu0 0
    %840 = vmatpush2.bf16.msra.mxu0 0
    %841 = vmatprep.subr.bf16.mxu0 0
    %842 = vmatpush2.bf16.msra.mxu0 0
    %843 = vmatprep.subr.bf16.mxu0 0
    %844 = vmatpush2.bf16.msra.mxu0 0
    %845 = vmatprep.subr.bf16.mxu0 0
    %846 = vmatpush2.bf16.msra.mxu0 0
    %847 = vmatprep.subr.bf16.mxu0 0
    %848 = vmatpush2.bf16.msra.mxu0 0
    %849 = vmatprep.subr.bf16.mxu0 0
    %850 = vmatpush2.bf16.msra.mxu0 0
    %851 = vmatprep.subr.bf16.mxu0 0
    %852 = vmatpush2.bf16.msra.mxu0 0
    %853 = vmatprep.mubr.bf16.mxu0 0
    %854 = vmatmul.mubr.bf16.gmra.mxu0 %v749
    %v855 = vpop.f32.mrf.mxu0
    %v856 = vadd.f32 %v771, %v855
    %v857 = vpop.f32.mrf.mxu0
    %v858 = vpop.f32.mrf.mxu0
    %v859 = vadd.f32 %v771, %v858
    %v860 = vpop.f32.mrf.mxu0
    %861 = vdwg.mxu0
    %862 = vst [vmem:[%s6] sm:$0xff] %v856
    %863 = vst [vmem:[%s7] sm:$0xff] %v859
    // Predicated region
    $region30: #{siamese_forward.1} parent=1 // pred_check
      _
    $region31: #{siamese_forward.1} parent=1 // pred_check_branch
      %865 = sbr.rel (0) target = $region33
    $region32: #{siamese_forward.1} parent=1 // pred_region
      _
    $region33: #{siamese_forward.1} parent=1 // pred_fallthru
      _
    // Predicated region
    $region34: #{siamese_forward.1} parent=1 // pred_check
      _
    $region35: #{siamese_forward.1} parent=1 // pred_check_branch
      %867 = sbr.rel (0) target = $region37
    $region36: #{siamese_forward.1} parent=1 // pred_region
      _
    $region37: #{siamese_forward.1} parent=1 // pred_fallthru
      _
    // Predicated region
    $region38: #{siamese_forward.1} parent=1 // pred_check
      _
    $region39: #{siamese_forward.1} parent=1 // pred_check_branch
      %869 = sbr.rel (0) target = $region41
    $region40: #{siamese_forward.1} parent=1 // pred_region
      _
    $region41: #{siamese_forward.1} parent=1 // pred_fallthru
      _
    // Predicated region
    $region42: #{siamese_forward.1} parent=1 // pred_check
      _
    $region43: #{siamese_forward.1} parent=1 // pred_check_branch
      %871 = sbr.rel (0) target = $region45
    $region44: #{siamese_forward.1} parent=1 // pred_region
      _
    $region45: #{siamese_forward.1} parent=1 // pred_fallthru
      _
    %872 = vsyncpa [#allocation3], 1

</llo_original>
